<compile_context>
chip_gen: v6e
topology: v6e:2x2x1
jax: 0.10.0
libtpu: 0.0.40
codegen_flags: <defaults>
</compile_context>

<pallas_src>
import jax
import jax.numpy as jnp
from jax.experimental import pallas as pl
from jax.experimental.pallas import tpu as pltpu


def _fusion_kernel(x_ref, w_ref, o_ref):
    # (Bb, ..., Lb) * (1, ..., Lb): pure VPU elementwise, broadcast over the
    # leading axis.  HBM-bandwidth bound; nothing else to do in-kernel.
    o_ref[...] = x_ref[...] * w_ref[...]


def _sublane_quantum(dtype):
    # 8 rows for 32-bit, 16 for 16-bit, 32 for 8-bit (packed sublanes).
    itemsize = jnp.dtype(dtype).itemsize
    return max(8, 32 // itemsize)


def _pick_block(dim, quantum, target):
    """Pick a block size along one axis.

    Returns the full dim when dim <= quantum (full-extent blocks are always
    legal).  Otherwise returns a quantum-aligned block <= target, preferring
    an exact divisor of `dim` (no ragged edge); if no divisor exists the
    caller uses a cdiv grid and Pallas pads the edge block.
    """
    if dim <= quantum:
        return dim
    target = max(quantum, min(dim, target))
    blk = (target // quantum) * quantum
    cand = blk
    while cand >= quantum:
        if dim % cand == 0:
            return cand
        cand -= quantum
    return blk  # aligned, non-divisor; ragged edge handled by cdiv grid


_BLOCK_TARGET_BYTES = 4 << 20  # ~4 MiB x-block => ~5-12% pipeline overhead
_VMEM_LIMIT_CAP = 48 << 20     # stay well under v7x's 64 MiB physical VMEM


def fusion_layer(x, weights):
    """x: (B, T, N, D), weights: (1, T, N, D) -> (B, T, N, D).  x * weights."""
    B, T, N, D = x.shape
    assert weights.shape == (1, T, N, D)
    dtype = x.dtype
    itemsize = jnp.dtype(dtype).itemsize
    squant = _sublane_quantum(dtype)

    if B >= squant:
        # --- 2D lane-dense path: (B, L) * (1, L), L = T*N*D ------------------
        L = T * N * D
        x2 = x.reshape(B, L)
        w2 = weights.reshape(1, L)

        # Batch block up to 8x the sublane quantum; lane block scaled so the
        # (Bb, Lb) block hits ~4 MiB.
        Bb = _pick_block(B, squant, 8 * squant)
        lb_target = max(128, _BLOCK_TARGET_BYTES // (itemsize * Bb))
        Lb = _pick_block(L, 128, lb_target)

        # L-axis outer, batch-axis innermost: the weight block index (0, j)
        # does not change across consecutive grid steps, so its DMA is skipped.
        grid = (pl.cdiv(L, Lb), pl.cdiv(B, Bb))

        block_bytes = Bb * Lb * itemsize
        w_bytes = Lb * itemsize
        vmem_limit = int(min(_VMEM_LIMIT_CAP,
                             2 * 2 * block_bytes + 2 * w_bytes + (2 << 20)))

        out2 = pl.pallas_call(
            _fusion_kernel,
            out_shape=jax.ShapeDtypeStruct((B, L), dtype),
            grid=grid,
            in_specs=[
                pl.BlockSpec((Bb, Lb), lambda j, i: (i, j)),   # x tile
                pl.BlockSpec((1, Lb), lambda j, i: (0, j)),    # shared weights
            ],
            out_specs=pl.BlockSpec((Bb, Lb), lambda j, i: (i, j)),
            compiler_params=pltpu.CompilerParams(
                dimension_semantics=("parallel", "parallel"),
                vmem_limit_bytes=vmem_limit,
            ),
        )(x2, w2)
        return out2.reshape(B, T, N, D)

    # --- Small-batch path (B < sublane quantum): 3D (B, T, C) view -----------
    # Sublane axis becomes T (full (8,128) vreg occupancy) instead of tiny B.
    C = N * D
    x3 = x.reshape(B, T, C)
    w3 = weights.reshape(1, T, C)

    Tb = _pick_block(T, squant, 8 * squant)
    cb_target = max(128, _BLOCK_TARGET_BYTES // (itemsize * B * Tb))
    Cb = _pick_block(C, 128, cb_target)

    grid = (pl.cdiv(C, Cb), pl.cdiv(T, Tb))  # lane axis outer, sublane inner

    block_bytes = B * Tb * Cb * itemsize
    w_bytes = Tb * Cb * itemsize
    vmem_limit = int(min(_VMEM_LIMIT_CAP,
                         2 * 2 * block_bytes + 2 * 2 * w_bytes + (2 << 20)))

    out3 = pl.pallas_call(
        _fusion_kernel,
        out_shape=jax.ShapeDtypeStruct((B, T, C), dtype),
        grid=grid,
        in_specs=[
            pl.BlockSpec((B, Tb, Cb), lambda c, t: (0, t, c)),   # x tile
            pl.BlockSpec((1, Tb, Cb), lambda c, t: (0, t, c)),   # weights
        ],
        out_specs=pl.BlockSpec((B, Tb, Cb), lambda c, t: (0, t, c)),
        compiler_params=pltpu.CompilerParams(
            dimension_semantics=("parallel", "parallel"),
            vmem_limit_bytes=vmem_limit,
        ),
    )(x3, w3)
    return out3.reshape(B, T, N, D)


def _check(B, out_window, n, out_dim, key):
    kx, kw = jax.random.split(key)
    x = jax.random.normal(kx, (B, out_window, n, out_dim), dtype=jnp.float32)
    w = jax.random.normal(kw, (1, out_window, n, out_dim), dtype=jnp.float32)
    out = jax.block_until_ready(fusion_layer(x, w))
    ref = x * w
    assert out.shape == ref.shape
    assert jnp.allclose(out, ref, atol=1e-6, rtol=1e-6)


if __name__ == "__main__":
    key = jax.random.PRNGKey(0)
    k0, k1, k2 = jax.random.split(key, 3)

    # Small batch (B < 8) exercises the 3D (B, T, N*D) path.
    _check(B=2, out_window=8, n=16, out_dim=32, key=k0)
    # Larger batch exercises the 2D lane-dense path.
    _check(B=16, out_window=8, n=64, out_dim=128, key=k1)
    # Ragged batch (not a multiple of 8 after blocking) exercises cdiv padding.
    _check(B=24, out_window=8, n=48, out_dim=96, key=k2)

    print("KERNEL_OK")
</pallas_src>

<mosaic_0001>
module attributes {stable_mosaic.version = 11 : i64} {
  func.func @_fusion_kernel(%arg0: i32, %arg1: i32, %arg2: memref<2x8x512xf32, #tpu.memory_space<vmem>>, %arg3: memref<1x8x512xf32, #tpu.memory_space<vmem>>, %arg4: memref<2x8x512xf32, #tpu.memory_space<vmem>>) attributes {dimension_semantics = [#tpu.dimension_semantics<parallel>, #tpu.dimension_semantics<parallel>], iteration_bounds = array<i64: 1, 1>, scalar_prefetch = 0 : i64, scratch_operands = 0 : i64, tpu.core_type = #tpu.core_type<tc>, window_params = [{transform_indices = @transform_0, window_bounds = array<i64: 2, 8, 512>}, {transform_indices = @transform_1, window_bounds = array<i64: 1, 8, 512>}, {transform_indices = @transform_2, window_bounds = array<i64: 2, 8, 512>}]} {
    %c0 = arith.constant 0 : index
    %c0_0 = arith.constant 0 : index
    %c0_1 = arith.constant 0 : index
    %0 = vector.load %arg2[%c0, %c0_0, %c0_1] : memref<2x8x512xf32, #tpu.memory_space<vmem>>, vector<2x8x512xf32>
    %c0_2 = arith.constant 0 : index
    %c0_3 = arith.constant 0 : index
    %c0_4 = arith.constant 0 : index
    %1 = vector.load %arg3[%c0_2, %c0_3, %c0_4] : memref<1x8x512xf32, #tpu.memory_space<vmem>>, vector<1x8x512xf32>
    %2 = vector.broadcast %1 : vector<1x8x512xf32> to vector<2x8x512xf32>
    %3 = arith.mulf %0, %2 : vector<2x8x512xf32>
    %c0_5 = arith.constant 0 : index
    %c0_6 = arith.constant 0 : index
    %c0_7 = arith.constant 0 : index
    %4 = vector.load %arg4[%c0_5, %c0_6, %c0_7] : memref<2x8x512xf32, #tpu.memory_space<vmem>>, vector<2x8x512xf32>
    tpu.vector_store %arg4[%c0_5, %c0_6, %c0_7], %3 {strides = array<i32>} : memref<2x8x512xf32, #tpu.memory_space<vmem>>, vector<2x8x512xf32>,
    return
  }
  func.func @transform_0(%arg0: i32, %arg1: i32) -> (i32, i32, i32) {
    %c0_i32 = arith.constant 0 : i32
    %c0_i32_0 = arith.constant 0 : i32
    return %c0_i32, %arg1, %arg0 : i32, i32, i32
  }
  func.func @transform_1(%arg0: i32, %arg1: i32) -> (i32, i32, i32) {
    %c0_i32 = arith.constant 0 : i32
    %c0_i32_0 = arith.constant 0 : i32
    return %c0_i32, %arg1, %arg0 : i32, i32, i32
  }
  func.func @transform_2(%arg0: i32, %arg1: i32) -> (i32, i32, i32) {
    %c0_i32 = arith.constant 0 : i32
    %c0_i32_0 = arith.constant 0 : i32
    return %c0_i32, %arg1, %arg0 : i32, i32, i32
  }
}

</mosaic_0001>

<llo_original>
// kernel: tpu_custom_call.1
$region0: #{tpu_custom_call.1}
  #allocation0 [shape = 'u32[]', space=smem, size = 0x4, offset = 0x4, fixed_abs, tag = 'smem constant byte address 0x4 - core index']
  #allocation1 [shape = 'u32[144,128]{1,0:T(1,128)}', space=vmem, size = 0x12000, scoped, tag = 'internal scratch']
  %s0 = inlined_call_operand.hbm [shape: f32[2,8,512], index: 0, kind: input, shape index: {}]
  %s1 = inlined_call_operand.hbm [shape: f32[1,8,512], index: 1, kind: input, shape index: {}]
  %s2 = inlined_call_operand.hbm [shape: f32[2,8,512], index: 2, kind: output, shape index: {}]
  %s3 = sld [smem:[#allocation0]]
  $region26: #{tpu_custom_call.1} parent=0
    _
  %s5 = ssub.s32 1, %s3
  %s6 = scalar_select 0, %s5, %s3
  $region1: #{tpu_custom_call.1} parent=0
    #allocation2 [shape = 'u8[32768]{0}', space=vmem, size = 0x8000, scoped, tag = 'input window, operand 0, single buffered']
    #allocation3 [shape = 's32[1]{0}', space=sflag, size = 0x4, scoped, tag = 'scoped memory for tpu_custom_call.1']
    #allocation4 [shape = 's32[1]{0}', space=sflag, size = 0x4, scoped, tag = 'scoped memory for tpu_custom_call.1']
    #allocation5 [shape = 'u8[16384]{0}', space=vmem, size = 0x4000, scoped, tag = 'input window, operand 1, single buffered']
    #allocation6 [shape = 's32[1]{0}', space=sflag, size = 0x4, scoped, tag = 'scoped memory for tpu_custom_call.1']
    #allocation7 [shape = 'u8[32768]{0}', space=vmem, size = 0x8000, scoped, tag = 'output window, operand 0, single buffered']
    %7 = vsyncpa [#allocation3], 0
    %8 = vsyncpa [#allocation6], 0
    %9 = vsyncpa [#allocation4], 0
    // Predicated region
    $region2: #{tpu_custom_call.1} parent=1 // pred_check
      _
    $region3: #{tpu_custom_call.1} parent=1 // pred_check_branch
      %11 = sbr.rel (0) target = $region5
    $region4: #{tpu_custom_call.1} parent=1 // pred_region
      %s13 = ssub.s32 1024, 1024
      %14 = vsyncadd [#allocation3], %s13
      %s15 = sshll.u32 [#allocation2], 4
      %s16 = int_to_ptr.vmem [resolvable:$true] %s15
      %21 = dma.hbm_to_vmem [thread:$0]  %s0, 1024, %s16, [#allocation3], 512, 512, 32
    $region5: #{tpu_custom_call.1} parent=1 // pred_fallthru
      _
    // Predicated region
    $region6: #{tpu_custom_call.1} parent=1 // pred_check
      _
    $region7: #{tpu_custom_call.1} parent=1 // pred_check_branch
      %23 = sbr.rel (0) target = $region9
    $region8: #{tpu_custom_call.1} parent=1 // pred_region
      %s25 = ssub.s32 512, 512
      %26 = vsyncadd [#allocation6], %s25
      %s28 = sshll.u32 [#allocation5], 4
      %s29 = int_to_ptr.vmem [resolvable:$true] %s28
      %31 = dma.hbm_to_vmem [thread:$0]  %s1, 512, %s29, [#allocation6]
    $region9: #{tpu_custom_call.1} parent=1 // pred_fallthru
      _
    // Predicated region
    $region10: #{tpu_custom_call.1} parent=1 // pred_check
      _
    $region11: #{tpu_custom_call.1} parent=1 // pred_check_branch
      %33 = sbr.rel (0) target = $region13
    $region12: #{tpu_custom_call.1} parent=1 // pred_region
      %34 = dma.done [#allocation3], 1024
    $region13: #{tpu_custom_call.1} parent=1 // pred_fallthru
      _
    // Predicated region
    $region14: #{tpu_custom_call.1} parent=1 // pred_check
      _
    $region15: #{tpu_custom_call.1} parent=1 // pred_check_branch
      %36 = sbr.rel (0) target = $region17
    $region16: #{tpu_custom_call.1} parent=1 // pred_region
      %37 = dma.done [#allocation6], 512
    $region17: #{tpu_custom_call.1} parent=1 // pred_fallthru
      _
    %v38 = vld [vmem:[#allocation2] sm:$0xff]
    %v39 = vld [vmem:[#allocation2 + $0x8] sm:$0xff]
    %v40 = vld [vmem:[#allocation2 + $0x10] sm:$0xff]
    %v41 = vld [vmem:[#allocation2 + $0x18] sm:$0xff]
    %v42 = vld [vmem:[#allocation2 + $0x20] sm:$0xff]
    %v43 = vld [vmem:[#allocation2 + $0x28] sm:$0xff]
    %v44 = vld [vmem:[#allocation2 + $0x30] sm:$0xff]
    %v45 = vld [vmem:[#allocation2 + $0x38] sm:$0xff]
    %v46 = vld [vmem:[#allocation5] sm:$0xff]
    %v47 = vld [vmem:[#allocation5 + $0x8] sm:$0xff]
    %v48 = vld [vmem:[#allocation5 + $0x10] sm:$0xff]
    %v49 = vld [vmem:[#allocation5 + $0x18] sm:$0xff]
    %v50 = vmul.f32 %v38, %v46
    %v51 = vmul.f32 %v39, %v47
    %v52 = vmul.f32 %v40, %v48
    %v53 = vmul.f32 %v41, %v49
    %v54 = vmul.f32 %v42, %v46
    %v55 = vmul.f32 %v43, %v47
    %v56 = vmul.f32 %v44, %v48
    %v57 = vmul.f32 %v45, %v49
    %58 = vst [vmem:[#allocation7] sm:$0xff] %v50
    %59 = vst [vmem:[#allocation7 + $0x8] sm:$0xff] %v51
    %60 = vst [vmem:[#allocation7 + $0x10] sm:$0xff] %v52
    %61 = vst [vmem:[#allocation7 + $0x18] sm:$0xff] %v53
    %62 = vst [vmem:[#allocation7 + $0x20] sm:$0xff] %v54
    %63 = vst [vmem:[#allocation7 + $0x28] sm:$0xff] %v55
    %64 = vst [vmem:[#allocation7 + $0x30] sm:$0xff] %v56
    %65 = vst [vmem:[#allocation7 + $0x38] sm:$0xff] %v57
    // Predicated region
    $region18: #{tpu_custom_call.1} parent=1 // pred_check
      _
    $region19: #{tpu_custom_call.1} parent=1 // pred_check_branch
      %67 = sbr.rel (0) target = $region21
    $region20: #{tpu_custom_call.1} parent=1 // pred_region
      %s69 = ssub.s32 1024, 1024
      %70 = vsyncadd [#allocation4], %s69
      %s71 = sshll.u32 [#allocation7], 4
      %s72 = int_to_ptr.vmem [resolvable:$true] %s71
      %77 = dma.vmem_to_hbm [thread:$0]  %s72, 1024, %s2, [#allocation4], 512, 512, 32
    $region21: #{tpu_custom_call.1} parent=1 // pred_fallthru
      _
    // Predicated region
    $region22: #{tpu_custom_call.1} parent=1 // pred_check
      _
    $region23: #{tpu_custom_call.1} parent=1 // pred_check_branch
      %79 = sbr.rel (0) target = $region25
    $region24: #{tpu_custom_call.1} parent=1 // pred_region
      %80 = dma.done [#allocation4], 1024
    $region25: #{tpu_custom_call.1} parent=1 // pred_fallthru
      _
    %81 = vsyncpa [#allocation3], 1
    %82 = vsyncpa [#allocation6], 1
    %83 = vsyncpa [#allocation4], 1

</llo_original>
